<compile_context>
chip_gen: v6e
topology: v6e:2x2x1
jax: 0.10.0
libtpu: 0.0.40
codegen_flags: <defaults>
</compile_context>

<pallas_src>
import math

import jax
import jax.numpy as jnp
from jax.experimental import pallas as pl
from jax.experimental.pallas import tpu as pltpu


def _round_up(x: int, m: int) -> int:
    return ((x + m - 1) // m) * m


def _embed_kernel(x_ref, w_ref, o_ref):
    # x_ref: [TM, Kpad], w_ref: [Kpad, Ep], o_ref: [TM, Ep]
    # Zero-padded K columns / rows contribute nothing to the product.
    o_ref[...] = jnp.dot(x_ref[...], w_ref[...],
                         preferred_element_type=jnp.float32).astype(o_ref.dtype)


def graph_embedding_forward_pallas(batch_input: jax.Array,
                                   embedding: jax.Array,
                                   *, block_rows: int = 8192) -> jax.Array:
    """batch_input: [B, K, L], embedding: [K, E] -> [B, L, E] (float32)."""
    B, K, L = batch_input.shape
    K_w, E = embedding.shape
    assert K == K_w, "input_size mismatch between input and embedding"

    M = B * L
    Kpad = max(8, _round_up(K, 8))          # pack coords into >=8 lanes
    Ep = _round_up(E, 128)                  # lane-dense output stores

    x = batch_input.astype(jnp.float32)
    w = embedding.astype(jnp.float32)

    # Row tile: multiple of 8 (sublane), capped by block_rows and by VMEM
    # (keep one f32 output buffer <= ~8 MiB so double-buffering stays well
    # inside the scoped-VMEM limit on every generation).
    vmem_rows = max(8, ((8 * 1024 * 1024) // (4 * Ep)) // 8 * 8)
    TM0 = min(block_rows, vmem_rows, _round_up(M, 8))
    g = -(-M // TM0)                        # number of grid steps
    TM = _round_up(-(-M // g), 8)           # rebalance so padding waste is small
    Mp = TM * g

    # Single fused prep: [B,K,L] -> [M,K] then one pad for both rows and K.
    x_packed = jnp.pad(jnp.swapaxes(x, 1, 2).reshape(M, K),
                       ((0, Mp - M), (0, Kpad - K)))
    w_pad = jnp.pad(w, ((0, Kpad - K), (0, Ep - E)))

    out_flat = pl.pallas_call(
        _embed_kernel,
        out_shape=jax.ShapeDtypeStruct((Mp, Ep), jnp.float32),
        grid_spec=pltpu.PrefetchScalarGridSpec(
            num_scalar_prefetch=0,
            grid=(g,),
            in_specs=[
                pl.BlockSpec((TM, Kpad), lambda i: (i, 0)),     # packed coords
                pl.BlockSpec((Kpad, Ep), lambda i: (0, 0)),     # weights resident
            ],
            out_specs=pl.BlockSpec((TM, Ep), lambda i: (i, 0)),
        ),
        compiler_params=pltpu.CompilerParams(
            dimension_semantics=("parallel",),   # v7x: shard grid steps across 2 TCs
            vmem_limit_bytes=32 * 1024 * 1024,   # explicit; needed on v5e, safe elsewhere
        ),
    )(x_packed, w_pad)

    return out_flat[:M, :E].reshape(B, L, E)


def graph_embedding_forward(batch_input: jax.Array,
                            embedding: jax.Array,
                            *, block_rows: int = 8192,
                            min_rows_for_pallas: int = 4096) -> jax.Array:
    """Dispatcher: tiny problems (B*L below threshold) use a fused XLA einsum
    (pallas_call launch cost would exceed the whole op); larger ones use the
    Pallas kernel."""
    B, K, L = batch_input.shape
    if B * L < min_rows_for_pallas:
        return jnp.einsum("bkl,ke->ble",
                          batch_input.astype(jnp.float32),
                          embedding.astype(jnp.float32))
    return graph_embedding_forward_pallas(batch_input, embedding,
                                          block_rows=block_rows)


def init_embedding(key, input_size: int, embedding_size: int) -> jax.Array:
    # Matches nn.Parameter(...).data.uniform_(-1/sqrt(E), 1/sqrt(E))
    bound = 1.0 / math.sqrt(embedding_size)
    return jax.random.uniform(
        key, (input_size, embedding_size), dtype=jnp.float32,
        minval=-bound, maxval=bound,
    )


if __name__ == "__main__":
    key = jax.random.PRNGKey(0)
    k_w, k_x = jax.random.split(key)

    # TSP-50 style shapes: 2-D city coordinates, embedding_size = 128.
    B, K, L, E = 2, 2, 50, 128

    embedding = init_embedding(k_w, K, E)
    batch_input = jax.random.uniform(k_x, (B, K, L), dtype=jnp.float32)

    # Call the Pallas path directly so the kernel itself runs at this small size
    # (the dispatcher would route such tiny shapes to plain XLA).
    out = graph_embedding_forward_pallas(batch_input, embedding)
    out = jax.block_until_ready(out)

    # Reference check against plain-JAX einsum of the same math.
    ref = jnp.einsum("bkl,ke->ble", batch_input, embedding)
    assert out.shape == (B, L, E)
    assert jnp.allclose(out, ref, atol=1e-5, rtol=1e-5)

    print("KERNEL_OK")
</pallas_src>

<mosaic_0001>
module attributes {stable_mosaic.version = 11 : i64} {
  func.func @_embed_kernel(%arg0: i32, %arg1: memref<104x8xf32, #tpu.memory_space<vmem>>, %arg2: memref<8x128xf32, #tpu.memory_space<vmem>>, %arg3: memref<104x128xf32, #tpu.memory_space<vmem>>) attributes {dimension_semantics = [#tpu.dimension_semantics<parallel>], iteration_bounds = array<i64: 1>, scalar_prefetch = 0 : i64, scratch_operands = 0 : i64, tpu.core_type = #tpu.core_type<tc>, window_params = [{transform_indices = @transform_0, window_bounds = array<i64: 104, 8>}, {pipeline_mode = #tpu.pipeline_mode<synchronous>, transform_indices = @transform_1, window_bounds = array<i64: 8, 128>}, {transform_indices = @transform_2, window_bounds = array<i64: 104, 128>}]} {
    %c0 = arith.constant 0 : index
    %c0_0 = arith.constant 0 : index
    %0 = vector.load %arg1[%c0, %c0_0] : memref<104x8xf32, #tpu.memory_space<vmem>>, vector<104x8xf32>
    %c0_1 = arith.constant 0 : index
    %c0_2 = arith.constant 0 : index
    %1 = vector.load %arg2[%c0_1, %c0_2] : memref<8x128xf32, #tpu.memory_space<vmem>>, vector<8x128xf32>
    %cst = arith.constant dense<0.000000e+00> : vector<104x128xf32>
    %2 = tpu.matmul %0, %1, %cst {dimension_numbers = #tpu.dot_dimension_numbers<[1], [0], [0], [1], [0, 0, 1, 1], [], []>} : vector<104x8xf32>, vector<8x128xf32>, vector<104x128xf32> -> vector<104x128xf32>
    %c0_3 = arith.constant 0 : index
    %c0_4 = arith.constant 0 : index
    %3 = vector.load %arg3[%c0_3, %c0_4] : memref<104x128xf32, #tpu.memory_space<vmem>>, vector<104x128xf32>
    tpu.vector_store %arg3[%c0_3, %c0_4], %2 {strides = array<i32>} : memref<104x128xf32, #tpu.memory_space<vmem>>, vector<104x128xf32>,
    return
  }
  func.func @transform_0(%arg0: i32) -> (i32, i32) {
    %c0_i32 = arith.constant 0 : i32
    %c0_i32_0 = arith.constant 0 : i32
    return %arg0, %c0_i32 : i32, i32
  }
  func.func @transform_1(%arg0: i32) -> (i32, i32) {
    %c0_i32 = arith.constant 0 : i32
    %c0_i32_0 = arith.constant 0 : i32
    %c0_i32_1 = arith.constant 0 : i32
    return %c0_i32, %c0_i32_0 : i32, i32
  }
  func.func @transform_2(%arg0: i32) -> (i32, i32) {
    %c0_i32 = arith.constant 0 : i32
    %c0_i32_0 = arith.constant 0 : i32
    return %arg0, %c0_i32 : i32, i32
  }
}

</mosaic_0001>

<llo_original>
// kernel: tpu_custom_call.1
$region0: #{tpu_custom_call.1}
  #allocation0 [shape = 'u32[]', space=smem, size = 0x4, offset = 0x4, fixed_abs, tag = 'smem constant byte address 0x4 - core index']
  #allocation1 [shape = 'u32[144,128]{1,0:T(1,128)}', space=vmem, size = 0x12000, scoped, tag = 'internal scratch']
  %s0 = inlined_call_operand.vmem [shape: f32[104,8], index: 0, kind: input, shape index: {}]
  %s1 = inlined_call_operand.vmem [shape: f32[8,128], index: 1, kind: input, shape index: {}]
  %s2 = inlined_call_operand.hbm [shape: f32[104,128], index: 2, kind: output, shape index: {}]
  %s3 = sld [smem:[#allocation0]]
  $region18: #{tpu_custom_call.1} parent=0
    _
  %s5 = ssub.s32 1, %s3
  %s6 = scalar_select 0, %s5, %s3
  $region1: #{tpu_custom_call.1} parent=0
    #allocation2 [shape = 'u8[53248]{0}', space=vmem, size = 0xd000, scoped, tag = 'output window, operand 0, single buffered']
    #allocation3 [shape = 's32[1]{0}', space=sflag, size = 0x4, scoped, tag = 'scoped memory for tpu_custom_call.1']
    %7 = vsyncpa [#allocation3], 0
    // Predicated region
    $region2: #{tpu_custom_call.1} parent=1 // pred_check
      _
    $region3: #{tpu_custom_call.1} parent=1 // pred_check_branch
      %9 = sbr.rel (0) target = $region5
    $region4: #{tpu_custom_call.1} parent=1 // pred_region
      _
    $region5: #{tpu_custom_call.1} parent=1 // pred_fallthru
      _
    // Predicated region
    $region6: #{tpu_custom_call.1} parent=1 // pred_check
      _
    $region7: #{tpu_custom_call.1} parent=1 // pred_check_branch
      %11 = sbr.rel (0) target = $region9
    $region8: #{tpu_custom_call.1} parent=1 // pred_region
      _
    $region9: #{tpu_custom_call.1} parent=1 // pred_fallthru
      _
    %v12 = vld [vmem:[%s0] sm:$0xff]
    %v13 = vld [vmem:[%s0 + $0x8] sm:$0xff]
    %v14 = vld [vmem:[%s0 + $0x10] sm:$0xff]
    %v15 = vld [vmem:[%s0 + $0x18] sm:$0xff]
    %v16 = vld [vmem:[%s0 + $0x20] sm:$0xff]
    %v17 = vld [vmem:[%s0 + $0x28] sm:$0xff]
    %v18 = vld [vmem:[%s0 + $0x30] sm:$0xff]
    %v19 = vld [vmem:[%s0 + $0x38] sm:$0xff]
    %v20 = vld [vmem:[%s0 + $0x40] sm:$0xff]
    %v21 = vld [vmem:[%s0 + $0x48] sm:$0xff]
    %v22 = vld [vmem:[%s0 + $0x50] sm:$0xff]
    %v23 = vld [vmem:[%s0 + $0x58] sm:$0xff]
    %v24 = vld [vmem:[%s0 + $0x60] sm:$0xff]
    %v25 = vld [vmem:[%s1] sm:$0xff]
    %vm26 = vcmask 64512
    %v28 = vsel %vm26, %v12, 0
    %v31 = vsel %vm26, %v13, 0
    %v34 = vsel %vm26, %v14, 0
    %v37 = vsel %vm26, %v15, 0
    %v40 = vsel %vm26, %v16, 0
    %v43 = vsel %vm26, %v17, 0
    %v46 = vsel %vm26, %v18, 0
    %v49 = vsel %vm26, %v19, 0
    %v52 = vsel %vm26, %v20, 0
    %v55 = vsel %vm26, %v21, 0
    %v58 = vsel %vm26, %v22, 0
    %v61 = vsel %vm26, %v23, 0
    %v64 = vsel %vm26, %v24, 0
    %66 = vmatprep.subr.mxu0 0.0
    %67 = vmatpush1.msra.mxu0 0.0
    %68 = vmatprep.subr.mxu0 0.0
    %69 = vmatpush1.msra.mxu0 0.0
    %70 = vmatprep.subr.mxu0 0.0
    %71 = vmatpush1.msra.mxu0 0.0
    %72 = vmatprep.subr.mxu0 0.0
    %73 = vmatpush1.msra.mxu0 0.0
    %74 = vmatprep.subr.mxu0 0.0
    %75 = vmatpush1.msra.mxu0 0.0
    %76 = vmatprep.subr.mxu0 0.0
    %77 = vmatpush1.msra.mxu0 0.0
    %78 = vmatprep.subr.mxu0 0.0
    %79 = vmatpush1.msra.mxu0 0.0
    %80 = vmatprep.subr.mxu0 0.0
    %81 = vmatpush1.msra.mxu0 0.0
    %82 = vmatprep.subr.mxu0 0.0
    %83 = vmatpush1.msra.mxu0 0.0
    %84 = vmatprep.subr.mxu0 0.0
    %85 = vmatpush1.msra.mxu0 0.0
    %86 = vmatprep.subr.mxu0 0.0
    %87 = vmatpush1.msra.mxu0 0.0
    %88 = vmatprep.subr.mxu0 0.0
    %89 = vmatpush1.msra.mxu0 0.0
    %90 = vmatprep.subr.mxu0 0.0
    %91 = vmatpush1.msra.mxu0 0.0
    %92 = vmatprep.subr.mxu0 0.0
    %93 = vmatpush1.msra.mxu0 0.0
    %94 = vmatprep.subr.mxu0 0.0
    %95 = vmatpush1.msra.mxu0 0.0
    %96 = vmatprep.subr.mxu0 0.0
    %97 = vmatpush1.msra.mxu0 %v25
    %98 = vmatprep.subr.mxu0 0.0
    %99 = vmatpush2.msra.mxu0 0.0
    %100 = vmatprep.subr.mxu0 0.0
    %101 = vmatpush2.msra.mxu0 0.0
    %102 = vmatprep.subr.mxu0 0.0
    %103 = vmatpush2.msra.mxu0 0.0
    %104 = vmatprep.subr.mxu0 0.0
    %105 = vmatpush2.msra.mxu0 0.0
    %106 = vmatprep.subr.mxu0 0.0
    %107 = vmatpush2.msra.mxu0 0.0
    %108 = vmatprep.subr.mxu0 0.0
    %109 = vmatpush2.msra.mxu0 0.0
    %110 = vmatprep.subr.mxu0 0.0
    %111 = vmatpush2.msra.mxu0 0.0
    %112 = vmatprep.subr.mxu0 0.0
    %113 = vmatpush2.msra.mxu0 0.0
    %114 = vmatprep.subr.mxu0 0.0
    %115 = vmatpush2.msra.mxu0 0.0
    %116 = vmatprep.subr.mxu0 0.0
    %117 = vmatpush2.msra.mxu0 0.0
    %118 = vmatprep.subr.mxu0 0.0
    %119 = vmatpush2.msra.mxu0 0.0
    %120 = vmatprep.subr.mxu0 0.0
    %121 = vmatpush2.msra.mxu0 0.0
    %122 = vmatprep.subr.mxu0 0.0
    %123 = vmatpush2.msra.mxu0 0.0
    %124 = vmatprep.subr.mxu0 0.0
    %125 = vmatpush2.msra.mxu0 0.0
    %126 = vmatprep.subr.mxu0 0.0
    %127 = vmatpush2.msra.mxu0 0.0
    %128 = vmatprep.subr.mxu0 0.0
    %129 = vmatpush2.msra.mxu0 0.0
    %130 = vmatprep.mubr.f32.mxu0 0.0
    %131 = vmatmul.mubr.f32.gmra.mxu0 %v28
    %v132 = vpop.f32.mrf.mxu0
    %v133 = vadd.f32 0.0, %v132
    %v134 = vpop.f32.mrf.mxu0
    %135 = vmatprep.mubr.f32.mxu0 0.0
    %136 = vmatmul.mubr.f32.gmra.mxu0 %v31
    %v137 = vpop.f32.mrf.mxu0
    %v138 = vadd.f32 0.0, %v137
    %v139 = vpop.f32.mrf.mxu0
    %140 = vmatprep.mubr.f32.mxu0 0.0
    %141 = vmatmul.mubr.f32.gmra.mxu0 %v34
    %v142 = vpop.f32.mrf.mxu0
    %v143 = vadd.f32 0.0, %v142
    %v144 = vpop.f32.mrf.mxu0
    %145 = vmatprep.mubr.f32.mxu0 0.0
    %146 = vmatmul.mubr.f32.gmra.mxu0 %v37
    %v147 = vpop.f32.mrf.mxu0
    %v148 = vadd.f32 0.0, %v147
    %v149 = vpop.f32.mrf.mxu0
    %150 = vmatprep.mubr.f32.mxu0 0.0
    %151 = vmatmul.mubr.f32.gmra.mxu0 %v40
    %v152 = vpop.f32.mrf.mxu0
    %v153 = vadd.f32 0.0, %v152
    %v154 = vpop.f32.mrf.mxu0
    %155 = vmatprep.mubr.f32.mxu0 0.0
    %156 = vmatmul.mubr.f32.gmra.mxu0 %v43
    %v157 = vpop.f32.mrf.mxu0
    %v158 = vadd.f32 0.0, %v157
    %v159 = vpop.f32.mrf.mxu0
    %160 = vmatprep.mubr.f32.mxu0 0.0
    %161 = vmatmul.mubr.f32.gmra.mxu0 %v46
    %v162 = vpop.f32.mrf.mxu0
    %v163 = vadd.f32 0.0, %v162
    %v164 = vpop.f32.mrf.mxu0
    %165 = vmatprep.mubr.f32.mxu0 0.0
    %166 = vmatmul.mubr.f32.gmra.mxu0 %v49
    %v167 = vpop.f32.mrf.mxu0
    %v168 = vadd.f32 0.0, %v167
    %v169 = vpop.f32.mrf.mxu0
    %170 = vmatprep.mubr.f32.mxu0 0.0
    %171 = vmatmul.mubr.f32.gmra.mxu0 %v52
    %v172 = vpop.f32.mrf.mxu0
    %v173 = vadd.f32 0.0, %v172
    %v174 = vpop.f32.mrf.mxu0
    %175 = vmatprep.mubr.f32.mxu0 0.0
    %176 = vmatmul.mubr.f32.gmra.mxu0 %v55
    %v177 = vpop.f32.mrf.mxu0
    %v178 = vadd.f32 0.0, %v177
    %v179 = vpop.f32.mrf.mxu0
    %180 = vmatprep.mubr.f32.mxu0 0.0
    %181 = vmatmul.mubr.f32.gmra.mxu0 %v58
    %v182 = vpop.f32.mrf.mxu0
    %v183 = vadd.f32 0.0, %v182
    %v184 = vpop.f32.mrf.mxu0
    %185 = vmatprep.mubr.f32.mxu0 0.0
    %186 = vmatmul.mubr.f32.gmra.mxu0 %v61
    %v187 = vpop.f32.mrf.mxu0
    %v188 = vadd.f32 0.0, %v187
    %v189 = vpop.f32.mrf.mxu0
    %190 = vmatprep.mubr.f32.mxu0 0.0
    %191 = vmatmul.mubr.f32.gmra.mxu0 %v64
    %v192 = vpop.f32.mrf.mxu0
    %v193 = vadd.f32 0.0, %v192
    %v194 = vpop.f32.mrf.mxu0
    %195 = vdwg.mxu0
    %196 = vst [vmem:[#allocation2] sm:$0xff] %v133
    %197 = vst [vmem:[#allocation2 + $0x8] sm:$0xff] %v138
    %198 = vst [vmem:[#allocation2 + $0x10] sm:$0xff] %v143
    %199 = vst [vmem:[#allocation2 + $0x18] sm:$0xff] %v148
    %200 = vst [vmem:[#allocation2 + $0x20] sm:$0xff] %v153
    %201 = vst [vmem:[#allocation2 + $0x28] sm:$0xff] %v158
    %202 = vst [vmem:[#allocation2 + $0x30] sm:$0xff] %v163
    %203 = vst [vmem:[#allocation2 + $0x38] sm:$0xff] %v168
    %204 = vst [vmem:[#allocation2 + $0x40] sm:$0xff] %v173
    %205 = vst [vmem:[#allocation2 + $0x48] sm:$0xff] %v178
    %206 = vst [vmem:[#allocation2 + $0x50] sm:$0xff] %v183
    %207 = vst [vmem:[#allocation2 + $0x58] sm:$0xff] %v188
    %208 = vst [vmem:[#allocation2 + $0x60] sm:$0xff] %v193
    // Predicated region
    $region10: #{tpu_custom_call.1} parent=1 // pred_check
      _
    $region11: #{tpu_custom_call.1} parent=1 // pred_check_branch
      %210 = sbr.rel (0) target = $region13
    $region12: #{tpu_custom_call.1} parent=1 // pred_region
      %s212 = ssub.s32 1664, 1664
      %213 = vsyncadd [#allocation3], %s212
      %s214 = sshll.u32 [#allocation2], 4
      %s215 = int_to_ptr.vmem [resolvable:$true] %s214
      %220 = dma.vmem_to_hbm [thread:$0]  %s215, 1664, %s2, [#allocation3], 128, 128, 8
    $region13: #{tpu_custom_call.1} parent=1 // pred_fallthru
      _
    // Predicated region
    $region14: #{tpu_custom_call.1} parent=1 // pred_check
      _
    $region15: #{tpu_custom_call.1} parent=1 // pred_check_branch
      %222 = sbr.rel (0) target = $region17
    $region16: #{tpu_custom_call.1} parent=1 // pred_region
      %223 = dma.done [#allocation3], 1664
    $region17: #{tpu_custom_call.1} parent=1 // pred_fallthru
      _
    %224 = vsyncpa [#allocation3], 1

</llo_original>
